<compile_context>
chip_gen: v7x
topology: tpu7x:2x2x1
jax: 0.10.0
libtpu: 0.0.40
codegen_flags: <defaults>
</compile_context>

<pallas_src>
import functools

import jax
import jax.numpy as jnp
from jax.experimental import pallas as pl
from jax.experimental.pallas import tpu as pltpu


def ece_bin_sums_kernel(logits_ref, labels_ref, out_ref, acc_ref, *,
                        n_bins, n_valid, block_n, tiles_per_split):
    """Accumulates per-bin (sum_conf, sum_acc) into acc_ref (nb_pad, 128)."""
    s = pl.program_id(0)   # sample-axis split (parallel; megacore on v7x)
    i = pl.program_id(1)   # tile within the split (arbitrary; accumulator axis)

    @pl.when(i == 0)
    def _init():
        acc_ref[...] = jnp.zeros(acc_ref.shape, acc_ref.dtype)

    # Native (block_n, C) tile -> f32 -> lane-dense (C, block_n).  The cast
    # happens before the transpose so the relayout is always a plain 32-bit
    # transpose; XLU / MXU are idle in this kernel so it overlaps with the DMA.
    x = logits_ref[...].astype(jnp.float32)           # (bn, C)
    xt = jnp.transpose(x)                             # (C, bn)
    labels = labels_ref[...]                          # (1, bn) int32
    C, bn = xt.shape

    # --- softmax confidence (max prob) per sample column -------------------
    col_max = jnp.max(xt, axis=0, keepdims=True)                      # (1, bn)
    denom = jnp.sum(jnp.exp(xt - col_max), axis=0, keepdims=True)     # (1, bn)
    conf = 1.0 / denom          # exact divide; approx recip could shift bins

    # --- argmax (first-occurrence tie-break, like torch/jnp) ----------------
    class_iota = jax.lax.broadcasted_iota(jnp.int32, (C, bn), 0)
    pred = jnp.min(jnp.where(xt == col_max, class_iota, C),
                   axis=0, keepdims=True)                             # (1, bn)
    correct = (pred == labels).astype(jnp.float32)                    # (1, bn)

    # --- mask lanes past the true N (ragged last tile), BEFORE binning ------
    lane = jax.lax.broadcasted_iota(jnp.int32, (1, bn), 1)
    global_idx = (s * tiles_per_split + i) * block_n + lane
    valid = global_idx < n_valid
    conf = jnp.where(valid, conf, 0.0)       # zero contribution to every bin
    correct = jnp.where(valid, correct, 0.0)

    # --- single-pass binning: bin b = (b/n_bins, (b+1)/n_bins] ---------------
    nb_pad = acc_ref.shape[0]
    bin_id = jnp.clip(jnp.ceil(conf * n_bins).astype(jnp.int32) - 1,
                      0, n_bins - 1)                                  # (1, bn)
    bin_iota = jax.lax.broadcasted_iota(jnp.int32, (nb_pad, bn), 0)
    onehot = (bin_iota == bin_id).astype(jnp.float32)                 # (nb_pad, bn)

    acc_ref[:, 0:1] += jnp.sum(onehot * conf, axis=1, keepdims=True)
    acc_ref[:, 1:2] += jnp.sum(onehot * correct, axis=1, keepdims=True)

    # Store the accumulator to the HBM-backed output block once per split.
    @pl.when(i == pl.num_programs(1) - 1)
    def _store():
        out_ref[...] = acc_ref[...]


def _device_kind():
    try:
        return jax.devices()[0].device_kind.lower()
    except Exception:
        return ""


def _choose_block_n(N, C, itemsize, device_kind, tile_n):
    """Pick the sample-tile size.

    Target >= ~2 MiB of dense HBM bytes per grid step (amortize the ~0.35 us
    per-step overhead) while keeping the double-buffered logits tile within a
    per-generation VMEM budget.  The VMEM block for a (block_n, C) tile pads the
    minor dim to 128 lanes, so the budget uses the padded width.
    """
    if tile_n is not None:
        bn = max(128, (int(tile_n) // 128) * 128)
    else:
        c_pad = ((C + 127) // 128) * 128           # lane padding of (bn, C) in VMEM
        if ("v5 lite" in device_kind or "v5e" in device_kind
                or "v5lite" in device_kind):
            vmem_budget = 8 << 20     # v5e scoped-VMEM default is only 16 MiB
        else:
            vmem_budget = 20 << 20    # v6e/v7x scoped default 32 MiB (v7x phys 64 MiB)
        cap_vmem = vmem_budget // (2 * c_pad * itemsize)   # double-buffered tile
        want = (2 << 20) // max(C * itemsize, 1)           # ~2 MiB dense DMA / step
        bn = max(128, min(want, cap_vmem, 32768))
        bn = (bn // 128) * 128
    if N < 128:
        return N                        # single full-extent block (always legal)
    if N % 128 == 0:
        return min(bn, N)
    return min(bn, (N // 128) * 128)    # lane-aligned tiles; ragged tail is masked


def ece_loss(logits, labels, n_bins=15, tile_n=None, num_splits=None):
    """Pallas implementation of ECELoss.forward(logits, labels) -> shape (1,)."""
    N, C = logits.shape
    kind = _device_kind()

    block_n = _choose_block_n(N, C, jnp.dtype(logits.dtype).itemsize, kind, tile_n)
    tiles_total = pl.cdiv(N, block_n)

    # 2-way sample-axis split only on v7x (2 TensorCores per chip); on v5e/v6e a
    # split is a serial loop with duplicated init/finalize -> pure overhead.
    if num_splits is None:
        num_splits = 2 if "v7" in kind else 1
    n_splits = num_splits if (num_splits > 1 and tiles_total >= num_splits
                              and tiles_total % num_splits == 0) else 1
    tiles_per_split = tiles_total // n_splits

    nb_pad = ((n_bins + 7) // 8) * 8   # pad bins to a sublane multiple
    ACC_W = 128                        # lane-dense accumulator (cols 0,1 used)

    # Labels: free reshape to (1, N) (lane-dense), no HBM copy of logits.
    labels2d = labels.reshape(1, N).astype(jnp.int32)

    kernel = functools.partial(
        ece_bin_sums_kernel, n_bins=n_bins, n_valid=N,
        block_n=block_n, tiles_per_split=tiles_per_split)

    sample_idx = lambda s, i: (s * tiles_per_split + i, 0)
    label_idx = lambda s, i: (0, s * tiles_per_split + i)

    # VMEM use (double-buffered logits tile + labels + scratch + out) stays well
    # under the default scoped-VMEM limits chosen in _choose_block_n, so no
    # explicit vmem_limit_bytes is needed on any generation.
    sums = pl.pallas_call(
        kernel,
        out_shape=jax.ShapeDtypeStruct((n_splits, nb_pad, ACC_W), jnp.float32),
        grid=(n_splits, tiles_per_split),
        in_specs=[
            pl.BlockSpec((block_n, C), sample_idx),   # native (N, C) layout
            pl.BlockSpec((1, block_n), label_idx),
        ],
        out_specs=pl.BlockSpec((None, nb_pad, ACC_W), lambda s, i: (s, 0, 0)),
        scratch_shapes=[pltpu.VMEM((nb_pad, ACC_W), jnp.float32)],
        compiler_params=pltpu.CompilerParams(
            dimension_semantics=("parallel", "arbitrary")),
    )(logits, labels2d)

    # Tiny epilogue: combine per-split partial sums, then the nonlinear finalize.
    # Padded bins / padded accumulator lanes receive no contributions (exactly 0).
    total = jnp.sum(sums, axis=0)                      # (nb_pad, ACC_W)
    ece = jnp.sum(jnp.abs(total[:, 0] - total[:, 1])) / N
    return ece.reshape(1).astype(jnp.float32)


def ece_reference(logits, labels, n_bins=15):
    """Plain-JAX port of the PyTorch loop, for verification."""
    softmaxes = jax.nn.softmax(logits.astype(jnp.float32), axis=1)
    confidences = jnp.max(softmaxes, axis=1)
    predictions = jnp.argmax(softmaxes, axis=1)
    accuracies = (predictions == labels).astype(jnp.float32)
    ece = jnp.zeros((1,), jnp.float32)
    boundaries = jnp.linspace(0.0, 1.0, n_bins + 1)
    for b in range(n_bins):
        lo, hi = boundaries[b], boundaries[b + 1]
        in_bin = jnp.logical_and(confidences > lo, confidences <= hi).astype(jnp.float32)
        prop = jnp.mean(in_bin)
        s_conf = jnp.sum(confidences * in_bin)
        s_acc = jnp.sum(accuracies * in_bin)
        cnt = jnp.sum(in_bin)
        contrib = jnp.where(
            cnt > 0,
            jnp.abs(s_conf / jnp.maximum(cnt, 1.0) - s_acc / jnp.maximum(cnt, 1.0)) * prop,
            0.0,
        )
        ece = ece + contrib
    return ece


if __name__ == "__main__":
    k1, k2, k3, k4 = jax.random.split(jax.random.PRNGKey(0), 4)

    # Case 1: tiny single full-extent block (N < 128).
    N1, C1 = 64, 16
    logits1 = jax.random.normal(k1, (N1, C1), jnp.float32) * 2.0
    labels1 = jax.random.randint(k2, (N1,), 0, C1, dtype=jnp.int32)
    out1 = ece_loss(logits1, labels1, n_bins=15)
    jax.block_until_ready(out1)
    ref1 = ece_reference(logits1, labels1, n_bins=15)
    assert out1.shape == (1,)
    assert jnp.allclose(out1, ref1, atol=1e-5, rtol=1e-5), (out1, ref1)

    # Case 2: multi-tile grid with a ragged (masked) tail, small explicit tile.
    N2, C2 = 700, 16
    logits2 = jax.random.normal(k3, (N2, C2), jnp.float32) * 2.0
    labels2 = jax.random.randint(k4, (N2,), 0, C2, dtype=jnp.int32)
    out2 = ece_loss(logits2, labels2, n_bins=15, tile_n=256)
    jax.block_until_ready(out2)
    ref2 = ece_reference(logits2, labels2, n_bins=15)
    assert jnp.allclose(out2, ref2, atol=1e-5, rtol=1e-5), (out2, ref2)

    # Case 3: auto tile-size path (N a multiple of 128, single bigger block).
    N3, C3 = 1536, 16
    logits3 = jax.random.normal(k1, (N3, C3), jnp.float32) * 2.0
    labels3 = jax.random.randint(k2, (N3,), 0, C3, dtype=jnp.int32)
    out3 = ece_loss(logits3, labels3, n_bins=15)
    jax.block_until_ready(out3)
    ref3 = ece_reference(logits3, labels3, n_bins=15)
    assert jnp.allclose(out3, ref3, atol=1e-5, rtol=1e-5), (out3, ref3)

    print("KERNEL_OK")
</pallas_src>

<mosaic_0001>
module attributes {stable_mosaic.version = 11 : i64} {
  func.func @ece_bin_sums_kernel(%arg0: i32, %arg1: i32, %arg2: memref<64x16xf32, #tpu.memory_space<vmem>>, %arg3: memref<1x64xi32, #tpu.memory_space<vmem>>, %arg4: memref<1x16x128xf32, #tpu.memory_space<vmem>>, %arg5: memref<16x128xf32, #tpu.memory_space<vmem>>) attributes {dimension_semantics = [#tpu.dimension_semantics<parallel>, #tpu.dimension_semantics<arbitrary>], iteration_bounds = array<i64: 1, 1>, scalar_prefetch = 0 : i64, scratch_operands = 1 : i64, tpu.core_type = #tpu.core_type<tc>, window_params = [{transform_indices = @transform_0, window_bounds = array<i64: 64, 16>}, {transform_indices = @transform_1, window_bounds = array<i64: 1, 64>}, {transform_indices = @transform_2, window_bounds = array<i64: 1, 16, 128>}]} {
    %c0_i32 = arith.constant 0 : i32
    %0 = arith.cmpi eq, %arg1, %c0_i32 : i32
    %1 = arith.extui %0 : i1 to i32
    %c0_i32_0 = arith.constant 0 : i32
    %2 = arith.cmpi ne, %1, %c0_i32_0 : i32
    scf.if %2 {
      %cst_24 = arith.constant 0.000000e+00 : f32
      %69 = vector.broadcast %cst_24 : f32 to vector<16x128xf32>
      %c0_25 = arith.constant 0 : index
      %c0_26 = arith.constant 0 : index
      %70 = vector.load %arg5[%c0_25, %c0_26] : memref<16x128xf32, #tpu.memory_space<vmem>>, vector<16x128xf32>
      tpu.vector_store %arg5[%c0_25, %c0_26], %69 {strides = array<i32>} : memref<16x128xf32, #tpu.memory_space<vmem>>, vector<16x128xf32>,
    } else {
    }
    %c0 = arith.constant 0 : index
    %c0_1 = arith.constant 0 : index
    %3 = vector.load %arg2[%c0, %c0_1] : memref<64x16xf32, #tpu.memory_space<vmem>>, vector<64x16xf32>
    %4 = tpu.transpose %3, [1, 0] : vector<64x16xf32> -> vector<16x64xf32>
    %c0_2 = arith.constant 0 : index
    %c0_3 = arith.constant 0 : index
    %5 = vector.load %arg3[%c0_2, %c0_3] : memref<1x64xi32, #tpu.memory_space<vmem>>, vector<1x64xi32>
    %cst = arith.constant dense<0xFF800000> : vector<64xf32>
    %6 = vector.multi_reduction <maximumf>, %4, %cst [0] : vector<16x64xf32> to vector<64xf32>
    %7 = vector.shape_cast %6 : vector<64xf32> to vector<1x64xf32>
    %8 = vector.broadcast %7 : vector<1x64xf32> to vector<16x64xf32>
    %9 = arith.subf %4, %8 : vector<16x64xf32>
    %10 = math.exp %9 : vector<16x64xf32>
    %cst_4 = arith.constant dense<0.000000e+00> : vector<64xf32>
    %11 = vector.multi_reduction <add>, %10, %cst_4 [0] : vector<16x64xf32> to vector<64xf32>
    %12 = vector.shape_cast %11 : vector<64xf32> to vector<1x64xf32>
    %cst_5 = arith.constant 1.000000e+00 : f32
    %13 = vector.broadcast %cst_5 : f32 to vector<1x64xf32>
    %14 = arith.divf %13, %12 : vector<1x64xf32>
    %15 = tpu.iota {dimensions = array<i32: 0>} : vector<16x64xi32>
    %16 = vector.broadcast %7 : vector<1x64xf32> to vector<16x64xf32>
    %17 = arith.cmpf oeq, %4, %16 : vector<16x64xf32>
    %c16_i32 = arith.constant 16 : i32
    %18 = vector.broadcast %c16_i32 : i32 to vector<16x64xi32>
    %19 = arith.select %17, %15, %18 : vector<16x64xi1>, vector<16x64xi32>
    %cst_6 = arith.constant dense<2147483647> : vector<64xi32>
    %20 = vector.multi_reduction <minsi>, %19, %cst_6 [0] : vector<16x64xi32> to vector<64xi32>
    %21 = vector.shape_cast %20 : vector<64xi32> to vector<1x64xi32>
    %22 = arith.cmpi eq, %21, %5 : vector<1x64xi32>
    %23 = arith.extui %22 : vector<1x64xi1> to vector<1x64xi32>
    %24 = arith.sitofp %23 : vector<1x64xi32> to vector<1x64xf32>
    %25 = tpu.iota {dimensions = array<i32: 1>} : vector<1x64xi32>
    %c1_i32 = arith.constant 1 : i32
    %26 = arith.muli %arg0, %c1_i32 : i32
    %27 = arith.addi %26, %arg1 : i32
    %c64_i32 = arith.constant 64 : i32
    %28 = arith.muli %27, %c64_i32 : i32
    %29 = vector.broadcast %28 : i32 to vector<1x64xi32>
    %30 = arith.addi %29, %25 : vector<1x64xi32>
    %c64_i32_7 = arith.constant 64 : i32
    %31 = vector.broadcast %c64_i32_7 : i32 to vector<1x64xi32>
    %32 = arith.cmpi slt, %30, %31 : vector<1x64xi32>
    %cst_8 = arith.constant 0.000000e+00 : f32
    %33 = vector.broadcast %cst_8 : f32 to vector<1x64xf32>
    %34 = arith.select %32, %14, %33 : vector<1x64xi1>, vector<1x64xf32>
    %cst_9 = arith.constant 0.000000e+00 : f32
    %35 = vector.broadcast %cst_9 : f32 to vector<1x64xf32>
    %36 = arith.select %32, %24, %35 : vector<1x64xi1>, vector<1x64xf32>
    %cst_10 = arith.constant 1.500000e+01 : f32
    %37 = vector.broadcast %cst_10 : f32 to vector<1x64xf32>
    %38 = arith.mulf %34, %37 : vector<1x64xf32>
    %39 = math.ceil %38 : vector<1x64xf32>
    %40 = arith.fptosi %39 : vector<1x64xf32> to vector<1x64xi32>
    %c1_i32_11 = arith.constant 1 : i32
    %41 = vector.broadcast %c1_i32_11 : i32 to vector<1x64xi32>
    %42 = arith.subi %40, %41 : vector<1x64xi32>
    %c0_i32_12 = arith.constant 0 : i32
    %c14_i32 = arith.constant 14 : i32
    %43 = vector.broadcast %c0_i32_12 : i32 to vector<1x64xi32>
    %44 = arith.maxsi %43, %42 : vector<1x64xi32>
    %45 = vector.broadcast %c14_i32 : i32 to vector<1x64xi32>
    %46 = arith.minsi %45, %44 : vector<1x64xi32>
    %47 = tpu.iota {dimensions = array<i32: 0>} : vector<16x64xi32>
    %48 = vector.broadcast %46 : vector<1x64xi32> to vector<16x64xi32>
    %49 = arith.cmpi eq, %47, %48 : vector<16x64xi32>
    %50 = arith.extui %49 : vector<16x64xi1> to vector<16x64xi32>
    %51 = arith.sitofp %50 : vector<16x64xi32> to vector<16x64xf32>
    %c0_13 = arith.constant 0 : index
    %c0_14 = arith.constant 0 : index
    %52 = vector.load %arg5[%c0_13, %c0_14] : memref<16x128xf32, #tpu.memory_space<vmem>>, vector<16x1xf32>
    %53 = vector.broadcast %34 : vector<1x64xf32> to vector<16x64xf32>
    %54 = arith.mulf %51, %53 : vector<16x64xf32>
    %cst_15 = arith.constant dense<0.000000e+00> : vector<16xf32>
    %55 = vector.multi_reduction <add>, %54, %cst_15 [1] : vector<16x64xf32> to vector<16xf32>
    %56 = vector.shape_cast %55 : vector<16xf32> to vector<16x1xf32>
    %57 = arith.addf %52, %56 : vector<16x1xf32>
    %c0_16 = arith.constant 0 : index
    %c0_17 = arith.constant 0 : index
    %58 = vector.load %arg5[%c0_16, %c0_17] : memref<16x128xf32, #tpu.memory_space<vmem>>, vector<16x1xf32>
    tpu.vector_store %arg5[%c0_16, %c0_17], %57 {strides = array<i32>} : memref<16x128xf32, #tpu.memory_space<vmem>>, vector<16x1xf32>,
    %c0_18 = arith.constant 0 : index
    %c1 = arith.constant 1 : index
    %59 = vector.load %arg5[%c0_18, %c1] : memref<16x128xf32, #tpu.memory_space<vmem>>, vector<16x1xf32>
    %60 = vector.broadcast %36 : vector<1x64xf32> to vector<16x64xf32>
    %61 = arith.mulf %51, %60 : vector<16x64xf32>
    %cst_19 = arith.constant dense<0.000000e+00> : vector<16xf32>
    %62 = vector.multi_reduction <add>, %61, %cst_19 [1] : vector<16x64xf32> to vector<16xf32>
    %63 = vector.shape_cast %62 : vector<16xf32> to vector<16x1xf32>
    %64 = arith.addf %59, %63 : vector<16x1xf32>
    %c0_20 = arith.constant 0 : index
    %c1_21 = arith.constant 1 : index
    %65 = vector.load %arg5[%c0_20, %c1_21] : memref<16x128xf32, #tpu.memory_space<vmem>>, vector<16x1xf32>
    tpu.vector_store %arg5[%c0_20, %c1_21], %64 {strides = array<i32>} : memref<16x128xf32, #tpu.memory_space<vmem>>, vector<16x1xf32>,
    %c0_i32_22 = arith.constant 0 : i32
    %66 = arith.cmpi eq, %arg1, %c0_i32_22 : i32
    %67 = arith.extui %66 : i1 to i32
    %c0_i32_23 = arith.constant 0 : i32
    %68 = arith.cmpi ne, %67, %c0_i32_23 : i32
    scf.if %68 {
      %c0_24 = arith.constant 0 : index
      %c0_25 = arith.constant 0 : index
      %69 = vector.load %arg5[%c0_24, %c0_25] : memref<16x128xf32, #tpu.memory_space<vmem>>, vector<16x128xf32>
      %c0_26 = arith.constant 0 : index
      %c0_27 = arith.constant 0 : index
      %c0_28 = arith.constant 0 : index
      %70 = vector.load %arg4[%c0_26, %c0_27, %c0_28] : memref<1x16x128xf32, #tpu.memory_space<vmem>>, vector<1x16x128xf32>
      %71 = vector.shape_cast %70 : vector<1x16x128xf32> to vector<16x128xf32>
      %72 = vector.shape_cast %69 : vector<16x128xf32> to vector<1x16x128xf32>
      tpu.vector_store %arg4[%c0_26, %c0_27, %c0_28], %72 {strides = array<i32>} : memref<1x16x128xf32, #tpu.memory_space<vmem>>, vector<1x16x128xf32>,
    } else {
    }
    return
  }
  func.func @transform_0(%arg0: i32, %arg1: i32) -> (i32, i32) {
    %c1_i32 = arith.constant 1 : i32
    %0 = arith.muli %arg0, %c1_i32 : i32
    %1 = arith.addi %0, %arg1 : i32
    %c0_i32 = arith.constant 0 : i32
    %c0_i32_0 = arith.constant 0 : i32
    return %1, %c0_i32 : i32, i32
  }
  func.func @transform_1(%arg0: i32, %arg1: i32) -> (i32, i32) {
    %c1_i32 = arith.constant 1 : i32
    %0 = arith.muli %arg0, %c1_i32 : i32
    %1 = arith.addi %0, %arg1 : i32
    %c0_i32 = arith.constant 0 : i32
    %c0_i32_0 = arith.constant 0 : i32
    return %c0_i32, %1 : i32, i32
  }
  func.func @transform_2(%arg0: i32, %arg1: i32) -> (i32, i32, i32) {
    %c0_i32 = arith.constant 0 : i32
    %c0_i32_0 = arith.constant 0 : i32
    %c0_i32_1 = arith.constant 0 : i32
    return %arg0, %c0_i32, %c0_i32_0 : i32, i32, i32
  }
}

</mosaic_0001>

<llo_original>
// kernel: tpu_custom_call.1
$region0: #{tpu_custom_call.1}
  #allocation0 [shape = 'u32[]', space=smem, size = 0x4, offset = 0x4, fixed_abs, tag = 'smem constant byte address 0x4 - core index']
  #allocation1 [shape = 'u32[144,128]{1,0:T(1,128)}', space=vmem, size = 0x12000, scoped, tag = 'internal scratch']
  #allocation2 [shape = 'f32[16,128]{1,0:T(8,128)}', space=vmem, size = 0x2000, scoped, tag = 'scratch operand']
  %s0 = inlined_call_operand.vmem [shape: f32[64,16], index: 0, kind: input, shape index: {}]
  %s1 = inlined_call_operand.vmem [shape: s32[1,64], index: 1, kind: input, shape index: {}]
  %s2 = inlined_call_operand.hbm [shape: f32[1,16,128], index: 2, kind: output, shape index: {}]
  %s3 = sld [smem:[#allocation0]]
  $region26: #{tpu_custom_call.1} parent=0
    _
  %s5 = ssub.s32 1, %s3
  %s6 = scalar_select 0, %s5, %s3
  $region1: #{tpu_custom_call.1} parent=0
    #allocation3 [shape = 'u8[8192]{0}', space=vmem, size = 0x2000, scoped, tag = 'output window, operand 0, single buffered']
    #allocation4 [shape = 's32[1]{0}', space=sflag, size = 0x4, scoped, tag = 'scoped memory for tpu_custom_call.1']
    %7 = vsyncpa [#allocation4], 0
    // Predicated region
    $region2: #{tpu_custom_call.1} parent=1 // pred_check
      _
    $region3: #{tpu_custom_call.1} parent=1 // pred_check_branch
      %9 = sbr.rel (0) target = $region5
    $region4: #{tpu_custom_call.1} parent=1 // pred_region
      %s10 = sadd.s32 0, 0
      %s11 = smul.u32 8, %s10
      %p12 = scmp.lt.s32.totalorder %s11, 7
      %s13 = scalar_select %p12, %s11, 7
      %s14 = smul.addr %s13, 8
      %s15 = scalar_lea.vmem %s0, %s14
      %s16 = sadd.s32 0, 0
      %s17 = smul.u32 8, %s16
    $region5: #{tpu_custom_call.1} parent=1 // pred_fallthru
      _
    // Predicated region
    $region6: #{tpu_custom_call.1} parent=1 // pred_check
      _
    $region7: #{tpu_custom_call.1} parent=1 // pred_check_branch
      %19 = sbr.rel (0) target = $region9
    $region8: #{tpu_custom_call.1} parent=1 // pred_region
      %s20 = sadd.s32 0, 0
      %p21 = scmp.lt.s32.totalorder %s20, 0
      %s22 = scalar_select %p21, %s20, 0
      %s23 = scalar_lea.vmem %s1, %s22
      %s24 = sadd.s32 0, 0
    $region9: #{tpu_custom_call.1} parent=1 // pred_fallthru
      _
    %s25 = sadd.s32 0, 0
    %s26 = smul.u32 8, %s25
    %p27 = scmp.lt.s32.totalorder %s26, 7
    %s28 = scalar_select %p27, %s26, 7
    %s29 = smul.addr %s28, 8
    %s30 = scalar_lea.vmem %s0, %s29
    %s31 = sadd.s32 0, 0
    %p32 = scmp.lt.s32.totalorder %s31, 0
    %s33 = scalar_select %p32, %s31, 0
    %s34 = scalar_lea.vmem %s1, %s33
    %s35 = sadd.s32 0, 0
    %s36 = smul.u32 8, %s35
    %p37 = scmp.lt.s32.totalorder %s36, 7
    %s38 = scalar_select %p37, %s36, 7
    %s39 = smul.addr %s38, 8
    %s40 = scalar_lea.vmem %s0, %s39
    %s41 = sadd.s32 0, 0
    %s42 = smul.u32 8, %s41
    %s43 = sadd.s32 0, 0
    %p44 = scmp.lt.s32.totalorder %s43, 0
    %s45 = scalar_select %p44, %s43, 0
    %s46 = scalar_lea.vmem %s1, %s45
    %s47 = sadd.s32 0, 0
    %p48 = scmp.eq.s32.totalorder 0, 0
    // Predicated region
    $region10: #{tpu_custom_call.1} parent=1 // pred_check
      %p49 = pneg %p48
    $region11: #{tpu_custom_call.1} parent=1 // pred_check_branch
      %51 = sbr.rel (%p49) target = $region13
    $region12: #{tpu_custom_call.1} parent=1 // pred_region
      %52 = vst [vmem:[#allocation2] sm:$0xff] 0.0
      %53 = vst [vmem:[#allocation2 + $0x8] sm:$0xff] 0.0
    $region13: #{tpu_custom_call.1} parent=1 // pred_fallthru
      _
    %v54 = vld [vmem:[%s40] sm:$0xff]
    %v55 = vld [vmem:[%s40 + $0x8] sm:$0xff]
    %v56 = vld [vmem:[%s40 + $0x10] sm:$0xff]
    %v57 = vld [vmem:[%s40 + $0x18] sm:$0xff]
    %v58 = vld [vmem:[%s40 + $0x20] sm:$0xff]
    %v59 = vld [vmem:[%s40 + $0x28] sm:$0xff]
    %v60 = vld [vmem:[%s40 + $0x30] sm:$0xff]
    %v61 = vld [vmem:[%s40 + $0x38] sm:$0xff]
    %62 = vxpose.xlu0.b32.start [1/16] %v54, 128
    %63 = vxpose.xlu0.b32.cont [2/16] %v55, 128
    %64 = vxpose.xlu0.b32.cont [3/16] %v56, 128
    %65 = vxpose.xlu0.b32.cont [4/16] %v57, 128
    %66 = vxpose.xlu0.b32.cont [5/16] %v58, 128
    %67 = vxpose.xlu0.b32.cont [6/16] %v59, 128
    %68 = vxpose.xlu0.b32.cont [7/16] %v60, 128
    %69 = vxpose.xlu0.b32.cont [8/16] %v61, 128
    %70 = vxpose.xlu0.b32.cont [9/16] 0.0, 128
    %71 = vxpose.xlu0.b32.cont [10/16] 0.0, 128
    %72 = vxpose.xlu0.b32.cont [11/16] 0.0, 128
    %73 = vxpose.xlu0.b32.cont [12/16] 0.0, 128
    %74 = vxpose.xlu0.b32.cont [13/16] 0.0, 128
    %75 = vxpose.xlu0.b32.cont [14/16] 0.0, 128
    %76 = vxpose.xlu0.b32.cont [15/16] 0.0, 128
    %77 = vxpose.xlu0.b32.end [16/16] 0.0, 128
    %v78 = vpop.trf.xlu0
    %v79 = vpop.trf.xlu0
    %v80 = vpop.trf.xlu0
    %v81 = vpop.trf.xlu0
    %v82 = vpop.trf.xlu0
    %v83 = vpop.trf.xlu0
    %v84 = vpop.trf.xlu0
    %v85 = vpop.trf.xlu0
    %v86 = vpop.trf.xlu0
    %v87 = vpop.trf.xlu0
    %v88 = vpop.trf.xlu0
    %v89 = vpop.trf.xlu0
    %v90 = vpop.trf.xlu0
    %v91 = vpop.trf.xlu0
    %v92 = vpop.trf.xlu0
    %v93 = vpop.trf.xlu0
    %v94 = vld [vmem:[%s46] sm:$0x1]
    %vm95 = vcmask 523264
    %v96 = vsel %vm95, %v78, -inf
    %v97 = vsel %vm95, %v79, -inf
    %v98 = vmax.f32 %v96, %v97
    %v99 = vrot.slane %v98, 4
    %v100 = vmax.f32 %v98, %v99
    %v101 = vrot.slane %v100, 2
    %v102 = vmax.f32 %v100, %v101
    %v103 = vrot.slane %v102, 1
    %v104 = vmax.f32 %v102, %v103
    %v105 = vsub.f32 %v78, %v104
    %v106 = vsub.f32 %v79, %v104
    %v107 = vmul.f32 %v105, 1.442695
    %v108 = vpow.pop %v107
    %v109 = vmul.f32 %v106, 1.442695
    %v110 = vpow.pop %v109
    %v111 = vsel %vm95, %v108, 0.0
    %v112 = vsel %vm95, %v110, 0.0
    %v113 = vadd.f32 %v111, %v112
    %v114 = vrot.slane %v113, 4
    %v115 = vadd.f32 %v113, %v114
    %v116 = vrot.slane %v115, 2
    %v117 = vadd.f32 %v115, %v116
    %v118 = vrot.slane %v117, 1
    %v119 = vadd.f32 %v117, %v118
    %v120 = vrcp.pop %v119
    %v121 = vmul.f32 1.0, %v120
    %v122 = vlaneseq
    %v123 = vshrl.u32 %v122, 7
    %v124 = vadd.s32 %v123, 8
    %vm125 = vcmp.eq.f32.partialorder %v78, %v104
    %vm126 = vcmp.eq.f32.partialorder %v79, %v104
    %v127 = vsel %vm125, %v123, 16
    %v128 = vsel %vm126, %v124, 16
    %v129 = vsel %vm95, %v127, 2147483647
    %v130 = vsel %vm95, %v128, 2147483647
    %vm131 = vcmp.lt.s32.totalorder %v129, %v130
    %v132 = vsel %vm131, %v129, %v130
    %v133 = vrot.slane %v132, 4
    %vm134 = vcmp.lt.s32.totalorder %v132, %v133
    %v135 = vsel %vm134, %v132, %v133
    %v136 = vrot.slane %v135, 2
    %vm137 = vcmp.lt.s32.totalorder %v135, %v136
    %v138 = vsel %vm137, %v135, %v136
    %v139 = vrot.slane %v138, 1
    %vm140 = vcmp.lt.s32.totalorder %v138, %v139
    %v141 = vsel %vm140, %v138, %v139
    %vm142 = vcmp.eq.s32.totalorder %v141, %v94
    %v143 = vsel %vm142, 1, 0
    %v144 = vcvt.s32.f32 %v143
    %v145 = vlaneseq
    %v146 = vand.u32 %v145, 127
    %s147 = sadd.s32 0, 0
    %s148 = smul.u32 %s147, 64
    %v149 = vstv %s148
    %v150 = vadd.s32 %v149, %v146
    %vm151 = vcmp.lt.s32.totalorder %v150, 64
    %v152 = vsel %vm151, %v121, 0.0
    %v153 = vsel %vm151, %v144, 0.0
    %v154 = vmul.f32 %v152, 15.0
    %v155 = vceil.f32 %v154
    %v156 = vcvt.f32.s32.to.zero.pseudo %v155
    %v157 = vsub.s32 %v156, 1
    %vm158 = vcmp.gt.s32.totalorder %v157, 0
    %v159 = vsel %vm158, %v157, 0
    %vm160 = vcmp.lt.s32.totalorder %v159, 14
    %v161 = vsel %vm160, %v159, 14
    %vm162 = vcmp.eq.s32.totalorder %v123, %v161
    %vm163 = vcmp.eq.s32.totalorder %v124, %v161
    %v164 = vsel %vm162, 1, 0
    %v165 = vsel %vm163, 1, 0
    %v166 = vcvt.s32.f32 %v164
    %v167 = vcvt.s32.f32 %v165
    %v168 = vld [vmem:[#allocation2] sm:$0xff]
    %v169 = vld [vmem:[#allocation2 + $0x8] sm:$0xff]
    %v170 = vmul.f32 %v166, %v152
    %v171 = vmul.f32 %v167, %v152
    %v172 = vsel %vm95, %v170, 0.0
    %173 = vadd.xlane.f32.xlu0 %v172
    %v174 = vpop.xlane.xlu0 %173
    %v175 = vsel %vm95, %v171, 0.0
    %176 = vadd.xlane.f32.xlu0 %v175
    %v177 = vpop.xlane.xlu0 %176
    %v178 = vadd.f32 %v168, %v174
    %v179 = vadd.f32 %v169, %v177
    %vm180 = vcmask 7168
    %181 = vst.msk [vmem:[#allocation2] sm:$0xff] %vm180, %v178
    %182 = vst.msk [vmem:[#allocation2 + $0x8] sm:$0xff] %vm180, %v179
    %v183 = vld [vmem:[#allocation2] sm:$0xff]
    %v184 = vld [vmem:[#allocation2 + $0x8] sm:$0xff]
    %v185 = vlaneseq
    %v186 = vshrl.u32 %v185, 7
    %v187 = vsub.s32 0, %v186
    %v188 = vrot.slane %v153, %v187
    %v189 = vmul.f32 %v166, %v188
    %v190 = vmul.f32 %v167, %v188
    %v191 = vsel %vm95, %v189, 0.0
    %192 = vadd.xlane.f32.xlu0 %v191
    %v193 = vpop.xlane.xlu0 %192
    %v194 = vsel %vm95, %v190, 0.0
    %195 = vadd.xlane.f32.xlu0 %v194
    %v196 = vpop.xlane.xlu0 %195
    %v197 = vadd.f32 %v183, %v193
    %v198 = vadd.f32 %v184, %v196
    %vm199 = vcmask 15368
    %200 = vst.msk [vmem:[#allocation2] sm:$0xff] %vm199, %v197
    %201 = vst.msk [vmem:[#allocation2 + $0x8] sm:$0xff] %vm199, %v198
    // Predicated region
    $region14: #{tpu_custom_call.1} parent=1 // pred_check
      %p202 = pneg %p48
    $region15: #{tpu_custom_call.1} parent=1 // pred_check_branch
      %204 = sbr.rel (%p202) target = $region17
    $region16: #{tpu_custom_call.1} parent=1 // pred_region
      %v205 = vld [vmem:[#allocation2] sm:$0xff]
      %v206 = vld [vmem:[#allocation2 + $0x8] sm:$0xff]
      %207 = vst [vmem:[#allocation3] sm:$0xff] %v205
      %208 = vst [vmem:[#allocation3 + $0x8] sm:$0xff] %v206
    $region17: #{tpu_custom_call.1} parent=1 // pred_fallthru
      _
    // Predicated region
    $region18: #{tpu_custom_call.1} parent=1 // pred_check
      _
    $region19: #{tpu_custom_call.1} parent=1 // pred_check_branch
      %210 = sbr.rel (0) target = $region21
    $region20: #{tpu_custom_call.1} parent=1 // pred_region
      %s212 = ssub.s32 256, 256
      %213 = vsyncadd [#allocation4], %s212
      %s214 = sshll.u32 [#allocation3], 4
      %s215 = int_to_ptr.vmem [resolvable:$true] %s214
      %220 = dma.vmem_to_hbm [thread:$0]  %s215, 256, %s2, [#allocation4], 128, 128, 8
    $region21: #{tpu_custom_call.1} parent=1 // pred_fallthru
      _
    // Predicated region
    $region22: #{tpu_custom_call.1} parent=1 // pred_check
      _
    $region23: #{tpu_custom_call.1} parent=1 // pred_check_branch
      %222 = sbr.rel (0) target = $region25
    $region24: #{tpu_custom_call.1} parent=1 // pred_region
      %223 = dma.done [#allocation4], 256
    $region25: #{tpu_custom_call.1} parent=1 // pred_fallthru
      _
    %224 = vsyncpa [#allocation4], 1

</llo_original>
